<compile_context>
chip_gen: v7x
topology: tpu7x:2x2x1
jax: 0.10.0
libtpu: 0.0.40
codegen_flags: <defaults>
</compile_context>

<pallas_src>
import jax
import jax.numpy as jnp
from jax.experimental import pallas as pl
from jax.experimental.pallas import tpu as pltpu


def _round_up(x, m):
    return ((x + m - 1) // m) * m


def _vmem_capacity_bytes():
    """Physical VMEM per core; conservative (v7x-sized) fallback."""
    try:
        cap = getattr(pltpu.get_tpu_info(), "vmem_capacity_bytes", None)
        if cap:
            return int(cap)
    except Exception:
        pass
    return 64 << 20


def _pick_c_tile(C, HW, pool_budget=4 << 20, tc_cap=512):
    """C-in tile: divides C, sublane-aligned (tc%8==0), lane-aligned block
    ((tc*HW)%128==0), with a bounded pool-matrix footprint.  Falls back to the
    full C (always a legal block) when no aligned divisor exists / C is tiny."""
    if C % 8 != 0 or C <= 8:
        return C
    best = None
    for d in range(8, min(C, tc_cap) + 1, 8):
        if C % d == 0 and (d * HW) % 128 == 0 and d * HW * d * 4 <= pool_budget:
            best = d
    # TODO(synk): for large C with no 128-aligned divisor (e.g. C=1000, HW=49)
    # the full-C fallback makes pool_mat large; a masked-sum fallback would cover it.
    return best if best is not None else C


def _pick_tiles(B, C, HW, n_pad, itemsize, usable_vmem):
    """Pick (batch_tile, c_tile) so the double-buffered working set fits VMEM."""
    tc = _pick_c_tile(C, HW)
    pool_bytes = tc * HW * tc * 4
    # tb-independent footprint (count Pallas's default double-buffering).
    fixed = (2 * pool_bytes + 2 * tc * C * 4 + 2 * C * n_pad * 4
             + 2 * 8 * (C + n_pad) * 4 + (2 << 20))
    if B < 8:
        # Block sublane dim == full array dim (legal without padding).
        return B, tc
    tb_cap = 512
    if B >= 16:
        # Keep >= 2 batch tiles so both v7x TensorCores get work.
        tb_cap = min(tb_cap, max(8, (_round_up(B, 8) // 2) // 8 * 8))
    tb_cap = min(tb_cap, (B // 8) * 8)          # never exceed the array extent

    def need(t):
        return (fixed + 2 * t * tc * HW * itemsize   # x blocks (double-buffered)
                + t * C * 4                          # h accumulator scratch
                + 2 * t * n_pad * 4)                 # cls output blocks

    tb = 8
    while tb * 2 <= tb_cap and need(tb * 2) <= usable_vmem:
        tb *= 2
    return tb, tc


def _fc_head_kernel(x_ref, pool_ref, w1t_ref, b1_ref, w2t_ref, b2_ref,
                    cls_ref, h_acc):
    # x_ref:    [tb, tc*HW]   flattened (channel-tile x spatial) x block
    # pool_ref: [tc*HW, tc]   block-diagonal spatial-mean matrix (1/HW folded in)
    # w1t_ref:  [tc, C]       conv1 weight slice (C_in tile x C_out)
    # b1_ref:   [1, C]
    # w2t_ref:  [C, Npad]     conv2 weight, pre-transposed + lane-padded
    # b2_ref:   [1, Npad]
    # cls_ref:  [tb, Npad]    output block (resident across the C-reduction axis)
    # h_acc:    [tb, C] f32   conv1 (pre-bias) accumulator
    j = pl.program_id(1)

    @pl.when(j == 0)
    def _init():
        h_acc[...] = jnp.zeros_like(h_acc)

    # AdaptiveAvgPool2d(1) on the MXU: [tb, tc*HW] @ [tc*HW, tc] -> [tb, tc].
    pooled = jnp.dot(x_ref[...], pool_ref[...],
                     preferred_element_type=jnp.float32)
    # Partial conv1 (1x1 conv == dense) over this C_in tile.
    h_acc[...] += jnp.dot(pooled, w1t_ref[...],
                          preferred_element_type=jnp.float32)

    @pl.when(j == pl.num_programs(1) - 1)
    def _epilogue():
        h = jnp.maximum(h_acc[...] + b1_ref[...], 0.0)          # bias + ReLU
        cls = jnp.dot(h, w2t_ref[...],
                      preferred_element_type=jnp.float32) + b2_ref[...]
        cls_ref[...] = cls.astype(cls_ref.dtype)


def prepare_params(params, input_channel, dim_cls, spatial_hw, lane=128):
    """One-time (hoisted) weight transpose, lane padding and pool-matrix build."""
    C, HW = input_channel, spatial_hw
    n_pad = _round_up(dim_cls, lane)
    tc = _pick_c_tile(C, HW)
    w1t = jnp.transpose(params["w1"].reshape(C, C))             # [C_in, C_out]
    w2t = jnp.transpose(params["w2"].reshape(dim_cls, C))       # [C, dim_cls]
    w2t = jnp.pad(w2t, ((0, 0), (0, n_pad - dim_cls)))          # lane-dense store
    b1 = params["b1"].reshape(1, C)
    b2 = jnp.pad(params["b2"], (0, n_pad - dim_cls)).reshape(1, n_pad)
    # pool_mat[c*HW + hw, c] = 1/HW  (spatial mean as an MXU matmul; the same
    # block-local matrix works for every C-in tile).
    k = jnp.arange(tc * HW, dtype=jnp.int32)
    pool_mat = ((k[:, None] // HW) == jnp.arange(tc, dtype=jnp.int32)[None, :]
                ).astype(jnp.float32) * (1.0 / HW)
    return {"w1t": w1t, "b1": b1, "w2t": w2t, "b2": b2, "pool_mat": pool_mat}


def fc_head_forward(x_flat, prepared, input_channel, dim_cls):
    """x_flat: [B, C*LS*LS] f32. Returns (cls [B, dim_cls], x [B, C, LS, LS])."""
    B, CHW = x_flat.shape
    C = input_channel
    LS = int(round((CHW / C) ** 0.5))
    assert C * LS * LS == CHW, "CHW must factor as C * LS * LS"
    HW = LS * LS

    x_nchw = x_flat.reshape(B, C, LS, LS)        # returned unchanged (the "x" output)

    pool_mat = prepared["pool_mat"]
    w1t, b1 = prepared["w1t"], prepared["b1"]
    w2t, b2 = prepared["w2t"], prepared["b2"]
    n_pad = w2t.shape[1]

    itemsize = jnp.dtype(x_flat.dtype).itemsize
    usable_vmem = max(32 << 20, _vmem_capacity_bytes() - (16 << 20))
    tb, tc = _pick_tiles(B, C, HW, n_pad, itemsize, usable_vmem)
    assert C % tc == 0
    assert (tc * HW) % 128 == 0 or tc == C
    assert pool_mat.shape == (tc * HW, tc), "prepare_params / tile-pick mismatch"
    chw_t = tc * HW

    grid = (pl.cdiv(B, tb), C // tc)             # batch parallel, C-in reduction last

    # VMEM accounting (counts default double-buffering of every input/output spec).
    needed = (2 * tb * chw_t * itemsize          # x blocks
              + 2 * chw_t * tc * 4               # pool matrix
              + 2 * tc * C * 4                   # conv1 weight tile
              + 2 * C * n_pad * 4                # conv2 weight (resident)
              + 2 * 8 * (C + n_pad) * 4          # biases (sublane-padded)
              + 2 * tb * n_pad * 4               # cls output blocks
              + tb * C * 4                       # h accumulator scratch
              + (2 << 20))                       # compiler-internal headroom
    vmem_limit = int(min(max(needed, 32 << 20), usable_vmem))

    cls_pad = pl.pallas_call(
        _fc_head_kernel,
        out_shape=jax.ShapeDtypeStruct((B, n_pad), jnp.float32),
        grid_spec=pltpu.PrefetchScalarGridSpec(
            num_scalar_prefetch=0,
            grid=grid,
            in_specs=[
                # x block: each batch row's DMA is one contiguous tc*HW*4-byte chunk.
                pl.BlockSpec((tb, chw_t), lambda i, j: (i, j)),
                # Pool matrix: constant block index -> DMA'd once, stays resident.
                pl.BlockSpec((chw_t, tc), lambda i, j: (0, 0)),
                # conv1 weight tiled along the C-in reduction axis (small residency).
                pl.BlockSpec((tc, C), lambda i, j: (j, 0)),
                pl.BlockSpec((1, C), lambda i, j: (0, 0)),
                # conv2 weight/bias: resident, lane-padded for unmasked stores.
                pl.BlockSpec((C, n_pad), lambda i, j: (0, 0)),
                pl.BlockSpec((1, n_pad), lambda i, j: (0, 0)),
            ],
            out_specs=pl.BlockSpec((tb, n_pad), lambda i, j: (i, 0)),
            scratch_shapes=[pltpu.VMEM((tb, C), jnp.float32)],
        ),
        compiler_params=pltpu.CompilerParams(
            dimension_semantics=("parallel", "arbitrary"),
            vmem_limit_bytes=vmem_limit,
        ),
    )(x_flat, pool_mat, w1t, b1, w2t, b2)

    cls = cls_pad[:, :dim_cls]                   # strip lane padding only
    return cls, x_nchw


def init_params(key, input_channel, dim_cls):
    """Deterministic synthetic init matching nn.Conv2d(k=1) parameter shapes."""
    k1, k2, k3, k4 = jax.random.split(key, 4)
    C = input_channel
    scale = 1.0 / (C ** 0.5)
    return {
        "w1": jax.random.uniform(k1, (C, C, 1, 1), jnp.float32, -scale, scale),
        "b1": jax.random.uniform(k2, (C,), jnp.float32, -scale, scale),
        "w2": jax.random.uniform(k3, (dim_cls, C, 1, 1), jnp.float32, -scale, scale),
        "b2": jax.random.uniform(k4, (dim_cls,), jnp.float32, -scale, scale),
    }


def _reference_forward(x_flat, params, input_channel):
    """Plain-JAX reference of the PyTorch forward (for a sanity check)."""
    B, CHW = x_flat.shape
    C = input_channel
    LS = int(round((CHW / C) ** 0.5))
    x = x_flat.reshape(B, C, LS, LS)
    pooled = jnp.mean(x, axis=(2, 3))                           # [B, C]
    w1 = params["w1"].reshape(C, C)
    w2 = params["w2"].reshape(-1, C)
    h = jnp.maximum(pooled @ w1.T + params["b1"], 0.0)
    cls = h @ w2.T + params["b2"]
    return cls, x


if __name__ == "__main__":
    B, C, LS, DIM_CLS = 2, 4, 16, 32
    key = jax.random.PRNGKey(0)
    k_x, k_p = jax.random.split(key)

    x_flat = jax.random.normal(k_x, (B, C * LS * LS), dtype=jnp.float32)
    params = init_params(k_p, C, DIM_CLS)

    # Hoisted one-time parameter preparation (transpose + padding + pool matrix).
    prepared = prepare_params(params, C, DIM_CLS, LS * LS)

    fwd = jax.jit(fc_head_forward, static_argnums=(2, 3))
    cls, x_out = fwd(x_flat, prepared, C, DIM_CLS)
    jax.block_until_ready(cls)
    jax.block_until_ready(x_out)

    cls_ref, x_ref_ = _reference_forward(x_flat, params, C)
    assert cls.shape == (B, DIM_CLS)
    assert x_out.shape == (B, C, LS, LS)
    assert jnp.allclose(cls, cls_ref, atol=1e-5, rtol=1e-5)
    assert jnp.allclose(x_out, x_ref_)

    print("KERNEL_OK")
</pallas_src>

<mosaic_0001>
module attributes {stable_mosaic.version = 11 : i64} {
  func.func @_fc_head_kernel(%arg0: i32, %arg1: i32, %arg2: memref<2x1024xf32, #tpu.memory_space<vmem>>, %arg3: memref<1024x4xf32, #tpu.memory_space<vmem>>, %arg4: memref<4x4xf32, #tpu.memory_space<vmem>>, %arg5: memref<1x4xf32, #tpu.memory_space<vmem>>, %arg6: memref<4x128xf32, #tpu.memory_space<vmem>>, %arg7: memref<1x128xf32, #tpu.memory_space<vmem>>, %arg8: memref<2x128xf32, #tpu.memory_space<vmem>>, %arg9: memref<2x4xf32, #tpu.memory_space<vmem>>) attributes {dimension_semantics = [#tpu.dimension_semantics<parallel>, #tpu.dimension_semantics<arbitrary>], iteration_bounds = array<i64: 1, 1>, scalar_prefetch = 0 : i64, scratch_operands = 1 : i64, tpu.core_type = #tpu.core_type<tc>, window_params = [{transform_indices = @transform_0, window_bounds = array<i64: 2, 1024>}, {pipeline_mode = #tpu.pipeline_mode<synchronous>, transform_indices = @transform_1, window_bounds = array<i64: 1024, 4>}, {transform_indices = @transform_2, window_bounds = array<i64: 4, 4>}, {pipeline_mode = #tpu.pipeline_mode<synchronous>, transform_indices = @transform_3, window_bounds = array<i64: 1, 4>}, {pipeline_mode = #tpu.pipeline_mode<synchronous>, transform_indices = @transform_4, window_bounds = array<i64: 4, 128>}, {pipeline_mode = #tpu.pipeline_mode<synchronous>, transform_indices = @transform_5, window_bounds = array<i64: 1, 128>}, {transform_indices = @transform_6, window_bounds = array<i64: 2, 128>}]} {
    %c0_i32 = arith.constant 0 : i32
    %0 = arith.cmpi eq, %arg1, %c0_i32 : i32
    %1 = arith.extui %0 : i1 to i32
    %c0_i32_0 = arith.constant 0 : i32
    %2 = arith.cmpi ne, %1, %c0_i32_0 : i32
    scf.if %2 {
      %cst_13 = arith.constant 0.000000e+00 : f32
      %14 = vector.broadcast %cst_13 : f32 to vector<2x4xf32>
      %c0_14 = arith.constant 0 : index
      %c0_15 = arith.constant 0 : index
      %15 = vector.load %arg9[%c0_14, %c0_15] : memref<2x4xf32, #tpu.memory_space<vmem>>, vector<2x4xf32>
      tpu.vector_store %arg9[%c0_14, %c0_15], %14 {strides = array<i32>} : memref<2x4xf32, #tpu.memory_space<vmem>>, vector<2x4xf32>,
    } else {
    }
    %c0 = arith.constant 0 : index
    %c0_1 = arith.constant 0 : index
    %3 = vector.load %arg2[%c0, %c0_1] : memref<2x1024xf32, #tpu.memory_space<vmem>>, vector<2x1024xf32>
    %c0_2 = arith.constant 0 : index
    %c0_3 = arith.constant 0 : index
    %4 = vector.load %arg3[%c0_2, %c0_3] : memref<1024x4xf32, #tpu.memory_space<vmem>>, vector<1024x4xf32>
    %cst = arith.constant dense<0.000000e+00> : vector<2x4xf32>
    %5 = tpu.matmul %3, %4, %cst {dimension_numbers = #tpu.dot_dimension_numbers<[1], [0], [0], [1], [0, 0, 1, 1], [], []>} : vector<2x1024xf32>, vector<1024x4xf32>, vector<2x4xf32> -> vector<2x4xf32>
    %c0_4 = arith.constant 0 : index
    %c0_5 = arith.constant 0 : index
    %6 = vector.load %arg9[%c0_4, %c0_5] : memref<2x4xf32, #tpu.memory_space<vmem>>, vector<2x4xf32>
    %c0_6 = arith.constant 0 : index
    %c0_7 = arith.constant 0 : index
    %7 = vector.load %arg4[%c0_6, %c0_7] : memref<4x4xf32, #tpu.memory_space<vmem>>, vector<4x4xf32>
    %cst_8 = arith.constant dense<0.000000e+00> : vector<2x4xf32>
    %8 = tpu.matmul %5, %7, %cst_8 {dimension_numbers = #tpu.dot_dimension_numbers<[1], [0], [0], [1], [0, 0, 1, 1], [], []>} : vector<2x4xf32>, vector<4x4xf32>, vector<2x4xf32> -> vector<2x4xf32>
    %9 = arith.addf %6, %8 : vector<2x4xf32>
    %c0_9 = arith.constant 0 : index
    %c0_10 = arith.constant 0 : index
    %10 = vector.load %arg9[%c0_9, %c0_10] : memref<2x4xf32, #tpu.memory_space<vmem>>, vector<2x4xf32>
    tpu.vector_store %arg9[%c0_9, %c0_10], %9 {strides = array<i32>} : memref<2x4xf32, #tpu.memory_space<vmem>>, vector<2x4xf32>,
    %c0_i32_11 = arith.constant 0 : i32
    %11 = arith.cmpi eq, %arg1, %c0_i32_11 : i32
    %12 = arith.extui %11 : i1 to i32
    %c0_i32_12 = arith.constant 0 : i32
    %13 = arith.cmpi ne, %12, %c0_i32_12 : i32
    scf.if %13 {
      %c0_13 = arith.constant 0 : index
      %c0_14 = arith.constant 0 : index
      %14 = vector.load %arg9[%c0_13, %c0_14] : memref<2x4xf32, #tpu.memory_space<vmem>>, vector<2x4xf32>
      %c0_15 = arith.constant 0 : index
      %c0_16 = arith.constant 0 : index
      %15 = vector.load %arg5[%c0_15, %c0_16] : memref<1x4xf32, #tpu.memory_space<vmem>>, vector<1x4xf32>
      %16 = vector.broadcast %15 : vector<1x4xf32> to vector<2x4xf32>
      %17 = arith.addf %14, %16 : vector<2x4xf32>
      %cst_17 = arith.constant 0.000000e+00 : f32
      %18 = vector.broadcast %cst_17 : f32 to vector<2x4xf32>
      %19 = arith.maximumf %17, %18 : vector<2x4xf32>
      %c0_18 = arith.constant 0 : index
      %c0_19 = arith.constant 0 : index
      %20 = vector.load %arg6[%c0_18, %c0_19] : memref<4x128xf32, #tpu.memory_space<vmem>>, vector<4x128xf32>
      %cst_20 = arith.constant dense<0.000000e+00> : vector<2x128xf32>
      %21 = tpu.matmul %19, %20, %cst_20 {dimension_numbers = #tpu.dot_dimension_numbers<[1], [0], [0], [1], [0, 0, 1, 1], [], []>} : vector<2x4xf32>, vector<4x128xf32>, vector<2x128xf32> -> vector<2x128xf32>
      %c0_21 = arith.constant 0 : index
      %c0_22 = arith.constant 0 : index
      %22 = vector.load %arg7[%c0_21, %c0_22] : memref<1x128xf32, #tpu.memory_space<vmem>>, vector<1x128xf32>
      %23 = vector.broadcast %22 : vector<1x128xf32> to vector<2x128xf32>
      %24 = arith.addf %21, %23 : vector<2x128xf32>
      %c0_23 = arith.constant 0 : index
      %c0_24 = arith.constant 0 : index
      %25 = vector.load %arg8[%c0_23, %c0_24] : memref<2x128xf32, #tpu.memory_space<vmem>>, vector<2x128xf32>
      tpu.vector_store %arg8[%c0_23, %c0_24], %24 {strides = array<i32>} : memref<2x128xf32, #tpu.memory_space<vmem>>, vector<2x128xf32>,
    } else {
    }
    return
  }
  func.func @transform_0(%arg0: i32, %arg1: i32) -> (i32, i32) {
    %c0_i32 = arith.constant 0 : i32
    return %arg0, %arg1 : i32, i32
  }
  func.func @transform_1(%arg0: i32, %arg1: i32) -> (i32, i32) {
    %c0_i32 = arith.constant 0 : i32
    %c0_i32_0 = arith.constant 0 : i32
    %c0_i32_1 = arith.constant 0 : i32
    return %c0_i32, %c0_i32_0 : i32, i32
  }
  func.func @transform_2(%arg0: i32, %arg1: i32) -> (i32, i32) {
    %c0_i32 = arith.constant 0 : i32
    %c0_i32_0 = arith.constant 0 : i32
    return %arg1, %c0_i32 : i32, i32
  }
  func.func @transform_3(%arg0: i32, %arg1: i32) -> (i32, i32) {
    %c0_i32 = arith.constant 0 : i32
    %c0_i32_0 = arith.constant 0 : i32
    %c0_i32_1 = arith.constant 0 : i32
    return %c0_i32, %c0_i32_0 : i32, i32
  }
  func.func @transform_4(%arg0: i32, %arg1: i32) -> (i32, i32) {
    %c0_i32 = arith.constant 0 : i32
    %c0_i32_0 = arith.constant 0 : i32
    %c0_i32_1 = arith.constant 0 : i32
    return %c0_i32, %c0_i32_0 : i32, i32
  }
  func.func @transform_5(%arg0: i32, %arg1: i32) -> (i32, i32) {
    %c0_i32 = arith.constant 0 : i32
    %c0_i32_0 = arith.constant 0 : i32
    %c0_i32_1 = arith.constant 0 : i32
    return %c0_i32, %c0_i32_0 : i32, i32
  }
  func.func @transform_6(%arg0: i32, %arg1: i32) -> (i32, i32) {
    %c0_i32 = arith.constant 0 : i32
    %c0_i32_0 = arith.constant 0 : i32
    return %arg0, %c0_i32 : i32, i32
  }
}

</mosaic_0001>

<llo_original>
// kernel: fc_head_forward.1
$region0: #{fc_head_forward.1}
  #allocation0 [shape = 'u32[]', space=smem, size = 0x4, offset = 0x4, fixed_abs, tag = 'smem constant byte address 0x4 - core index']
  #allocation1 [shape = 'u32[144,128]{1,0:T(1,128)}', space=vmem, size = 0x12000, scoped, tag = 'internal scratch']
  #allocation2 [shape = 'f32[2,4]{1,0:T(2,128)}', space=vmem, size = 0x400, scoped, tag = 'scratch operand']
  %s0 = inlined_call_operand.vmem [shape: f32[2,1024], index: 0, kind: input, shape index: {}]
  %s1 = inlined_call_operand.vmem [shape: f32[1024,4], index: 1, kind: input, shape index: {}]
  %s2 = inlined_call_operand.vmem [shape: f32[4,4], index: 2, kind: input, shape index: {}]
  %s3 = inlined_call_operand.vmem [shape: f32[1,4], index: 3, kind: input, shape index: {}]
  %s4 = inlined_call_operand.vmem [shape: f32[4,128], index: 4, kind: input, shape index: {}]
  %s5 = inlined_call_operand.vmem [shape: f32[1,128], index: 5, kind: input, shape index: {}]
  %s6 = inlined_call_operand.hbm [shape: f32[2,128], index: 6, kind: output, shape index: {}]
  %s7 = sld [smem:[#allocation0]]
  $region42: #{fc_head_forward.1} parent=0
    _
  %s9 = ssub.s32 1, %s7
  %s10 = scalar_select 0, %s9, %s7
  $region1: #{fc_head_forward.1} parent=0
    #allocation3 [shape = 'u8[1024]{0}', space=vmem, size = 0x400, scoped, tag = 'output window, operand 0, single buffered']
    #allocation4 [shape = 's32[1]{0}', space=sflag, size = 0x4, scoped, tag = 'scoped memory for fc_head_forward.1']
    %11 = vsyncpa [#allocation4], 0
    // Predicated region
    $region2: #{fc_head_forward.1} parent=1 // pred_check
      _
    $region3: #{fc_head_forward.1} parent=1 // pred_check_branch
      %13 = sbr.rel (0) target = $region5
    $region4: #{fc_head_forward.1} parent=1 // pred_region
      _
    $region5: #{fc_head_forward.1} parent=1 // pred_fallthru
      _
    // Predicated region
    $region6: #{fc_head_forward.1} parent=1 // pred_check
      _
    $region7: #{fc_head_forward.1} parent=1 // pred_check_branch
      %15 = sbr.rel (0) target = $region9
    $region8: #{fc_head_forward.1} parent=1 // pred_region
      _
    $region9: #{fc_head_forward.1} parent=1 // pred_fallthru
      _
    // Predicated region
    $region10: #{fc_head_forward.1} parent=1 // pred_check
      _
    $region11: #{fc_head_forward.1} parent=1 // pred_check_branch
      %17 = sbr.rel (0) target = $region13
    $region12: #{fc_head_forward.1} parent=1 // pred_region
      _
    $region13: #{fc_head_forward.1} parent=1 // pred_fallthru
      _
    // Predicated region
    $region14: #{fc_head_forward.1} parent=1 // pred_check
      _
    $region15: #{fc_head_forward.1} parent=1 // pred_check_branch
      %19 = sbr.rel (0) target = $region17
    $region16: #{fc_head_forward.1} parent=1 // pred_region
      _
    $region17: #{fc_head_forward.1} parent=1 // pred_fallthru
      _
    // Predicated region
    $region18: #{fc_head_forward.1} parent=1 // pred_check
      _
    $region19: #{fc_head_forward.1} parent=1 // pred_check_branch
      %21 = sbr.rel (0) target = $region21
    $region20: #{fc_head_forward.1} parent=1 // pred_region
      _
    $region21: #{fc_head_forward.1} parent=1 // pred_fallthru
      _
    // Predicated region
    $region22: #{fc_head_forward.1} parent=1 // pred_check
      _
    $region23: #{fc_head_forward.1} parent=1 // pred_check_branch
      %23 = sbr.rel (0) target = $region25
    $region24: #{fc_head_forward.1} parent=1 // pred_region
      _
    $region25: #{fc_head_forward.1} parent=1 // pred_fallthru
      _
    %p24 = scmp.eq.s32.totalorder 0, 0
    // Predicated region
    $region26: #{fc_head_forward.1} parent=1 // pred_check
      %p25 = pneg %p24
    $region27: #{fc_head_forward.1} parent=1 // pred_check_branch
      %27 = sbr.rel (%p25) target = $region29
    $region28: #{fc_head_forward.1} parent=1 // pred_region
      %vm28 = vcmask 25600
      %29 = vst.msk [vmem:[#allocation2] sm:$0x3] %vm28, 0.0
    $region29: #{fc_head_forward.1} parent=1 // pred_fallthru
      _
    %v30 = vld [vmem:[%s0] sm:$0xff]
    %v31 = vld [vmem:[%s0 + $0x8] sm:$0xff]
    %v32 = vld [vmem:[%s1] sm:$0xff]
    %v33 = vld [vmem:[%s1 + $0x8] sm:$0xff]
    %v34 = vld [vmem:[%s1 + $0x10] sm:$0xff]
    %v35 = vld [vmem:[%s1 + $0x18] sm:$0xff]
    %v36 = vld [vmem:[%s1 + $0x20] sm:$0xff]
    %v37 = vld [vmem:[%s1 + $0x28] sm:$0xff]
    %v38 = vld [vmem:[%s1 + $0x30] sm:$0xff]
    %v39 = vld [vmem:[%s1 + $0x38] sm:$0xff]
    %v40 = vld [vmem:[%s1 + $0x40] sm:$0xff]
    %v41 = vld [vmem:[%s1 + $0x48] sm:$0xff]
    %v42 = vld [vmem:[%s1 + $0x50] sm:$0xff]
    %v43 = vld [vmem:[%s1 + $0x58] sm:$0xff]
    %v44 = vld [vmem:[%s1 + $0x60] sm:$0xff]
    %v45 = vld [vmem:[%s1 + $0x68] sm:$0xff]
    %v46 = vld [vmem:[%s1 + $0x70] sm:$0xff]
    %v47 = vld [vmem:[%s1 + $0x78] sm:$0xff]
    %v48 = vld [vmem:[%s1 + $0x80] sm:$0xff]
    %v49 = vld [vmem:[%s1 + $0x88] sm:$0xff]
    %v50 = vld [vmem:[%s1 + $0x90] sm:$0xff]
    %v51 = vld [vmem:[%s1 + $0x98] sm:$0xff]
    %v52 = vld [vmem:[%s1 + $0xa0] sm:$0xff]
    %v53 = vld [vmem:[%s1 + $0xa8] sm:$0xff]
    %v54 = vld [vmem:[%s1 + $0xb0] sm:$0xff]
    %v55 = vld [vmem:[%s1 + $0xb8] sm:$0xff]
    %v56 = vld [vmem:[%s1 + $0xc0] sm:$0xff]
    %v57 = vld [vmem:[%s1 + $0xc8] sm:$0xff]
    %v58 = vld [vmem:[%s1 + $0xd0] sm:$0xff]
    %v59 = vld [vmem:[%s1 + $0xd8] sm:$0xff]
    %v60 = vld [vmem:[%s1 + $0xe0] sm:$0xff]
    %v61 = vld [vmem:[%s1 + $0xe8] sm:$0xff]
    %v62 = vld [vmem:[%s1 + $0xf0] sm:$0xff]
    %v63 = vld [vmem:[%s1 + $0xf8] sm:$0xff]
    %v64 = vld [vmem:[%s1 + $0x100] sm:$0xff]
    %v65 = vld [vmem:[%s1 + $0x108] sm:$0xff]
    %v66 = vld [vmem:[%s1 + $0x110] sm:$0xff]
    %v67 = vld [vmem:[%s1 + $0x118] sm:$0xff]
    %v68 = vld [vmem:[%s1 + $0x120] sm:$0xff]
    %v69 = vld [vmem:[%s1 + $0x128] sm:$0xff]
    %v70 = vld [vmem:[%s1 + $0x130] sm:$0xff]
    %v71 = vld [vmem:[%s1 + $0x138] sm:$0xff]
    %v72 = vld [vmem:[%s1 + $0x140] sm:$0xff]
    %v73 = vld [vmem:[%s1 + $0x148] sm:$0xff]
    %v74 = vld [vmem:[%s1 + $0x150] sm:$0xff]
    %v75 = vld [vmem:[%s1 + $0x158] sm:$0xff]
    %v76 = vld [vmem:[%s1 + $0x160] sm:$0xff]
    %v77 = vld [vmem:[%s1 + $0x168] sm:$0xff]
    %v78 = vld [vmem:[%s1 + $0x170] sm:$0xff]
    %v79 = vld [vmem:[%s1 + $0x178] sm:$0xff]
    %v80 = vld [vmem:[%s1 + $0x180] sm:$0xff]
    %v81 = vld [vmem:[%s1 + $0x188] sm:$0xff]
    %v82 = vld [vmem:[%s1 + $0x190] sm:$0xff]
    %v83 = vld [vmem:[%s1 + $0x198] sm:$0xff]
    %v84 = vld [vmem:[%s1 + $0x1a0] sm:$0xff]
    %v85 = vld [vmem:[%s1 + $0x1a8] sm:$0xff]
    %v86 = vld [vmem:[%s1 + $0x1b0] sm:$0xff]
    %v87 = vld [vmem:[%s1 + $0x1b8] sm:$0xff]
    %v88 = vld [vmem:[%s1 + $0x1c0] sm:$0xff]
    %v89 = vld [vmem:[%s1 + $0x1c8] sm:$0xff]
    %v90 = vld [vmem:[%s1 + $0x1d0] sm:$0xff]
    %v91 = vld [vmem:[%s1 + $0x1d8] sm:$0xff]
    %v92 = vld [vmem:[%s1 + $0x1e0] sm:$0xff]
    %v93 = vld [vmem:[%s1 + $0x1e8] sm:$0xff]
    %v94 = vld [vmem:[%s1 + $0x1f0] sm:$0xff]
    %v95 = vld [vmem:[%s1 + $0x1f8] sm:$0xff]
    %v96 = vld [vmem:[%s1 + $0x200] sm:$0xff]
    %v97 = vld [vmem:[%s1 + $0x208] sm:$0xff]
    %v98 = vld [vmem:[%s1 + $0x210] sm:$0xff]
    %v99 = vld [vmem:[%s1 + $0x218] sm:$0xff]
    %v100 = vld [vmem:[%s1 + $0x220] sm:$0xff]
    %v101 = vld [vmem:[%s1 + $0x228] sm:$0xff]
    %v102 = vld [vmem:[%s1 + $0x230] sm:$0xff]
    %v103 = vld [vmem:[%s1 + $0x238] sm:$0xff]
    %v104 = vld [vmem:[%s1 + $0x240] sm:$0xff]
    %v105 = vld [vmem:[%s1 + $0x248] sm:$0xff]
    %v106 = vld [vmem:[%s1 + $0x250] sm:$0xff]
    %v107 = vld [vmem:[%s1 + $0x258] sm:$0xff]
    %v108 = vld [vmem:[%s1 + $0x260] sm:$0xff]
    %v109 = vld [vmem:[%s1 + $0x268] sm:$0xff]
    %v110 = vld [vmem:[%s1 + $0x270] sm:$0xff]
    %v111 = vld [vmem:[%s1 + $0x278] sm:$0xff]
    %v112 = vld [vmem:[%s1 + $0x280] sm:$0xff]
    %v113 = vld [vmem:[%s1 + $0x288] sm:$0xff]
    %v114 = vld [vmem:[%s1 + $0x290] sm:$0xff]
    %v115 = vld [vmem:[%s1 + $0x298] sm:$0xff]
    %v116 = vld [vmem:[%s1 + $0x2a0] sm:$0xff]
    %v117 = vld [vmem:[%s1 + $0x2a8] sm:$0xff]
    %v118 = vld [vmem:[%s1 + $0x2b0] sm:$0xff]
    %v119 = vld [vmem:[%s1 + $0x2b8] sm:$0xff]
    %v120 = vld [vmem:[%s1 + $0x2c0] sm:$0xff]
    %v121 = vld [vmem:[%s1 + $0x2c8] sm:$0xff]
    %v122 = vld [vmem:[%s1 + $0x2d0] sm:$0xff]
    %v123 = vld [vmem:[%s1 + $0x2d8] sm:$0xff]
    %v124 = vld [vmem:[%s1 + $0x2e0] sm:$0xff]
    %v125 = vld [vmem:[%s1 + $0x2e8] sm:$0xff]
    %v126 = vld [vmem:[%s1 + $0x2f0] sm:$0xff]
    %v127 = vld [vmem:[%s1 + $0x2f8] sm:$0xff]
    %v128 = vld [vmem:[%s1 + $0x300] sm:$0xff]
    %v129 = vld [vmem:[%s1 + $0x308] sm:$0xff]
    %v130 = vld [vmem:[%s1 + $0x310] sm:$0xff]
    %v131 = vld [vmem:[%s1 + $0x318] sm:$0xff]
    %v132 = vld [vmem:[%s1 + $0x320] sm:$0xff]
    %v133 = vld [vmem:[%s1 + $0x328] sm:$0xff]
    %v134 = vld [vmem:[%s1 + $0x330] sm:$0xff]
    %v135 = vld [vmem:[%s1 + $0x338] sm:$0xff]
    %v136 = vld [vmem:[%s1 + $0x340] sm:$0xff]
    %v137 = vld [vmem:[%s1 + $0x348] sm:$0xff]
    %v138 = vld [vmem:[%s1 + $0x350] sm:$0xff]
    %v139 = vld [vmem:[%s1 + $0x358] sm:$0xff]
    %v140 = vld [vmem:[%s1 + $0x360] sm:$0xff]
    %v141 = vld [vmem:[%s1 + $0x368] sm:$0xff]
    %v142 = vld [vmem:[%s1 + $0x370] sm:$0xff]
    %v143 = vld [vmem:[%s1 + $0x378] sm:$0xff]
    %v144 = vld [vmem:[%s1 + $0x380] sm:$0xff]
    %v145 = vld [vmem:[%s1 + $0x388] sm:$0xff]
    %v146 = vld [vmem:[%s1 + $0x390] sm:$0xff]
    %v147 = vld [vmem:[%s1 + $0x398] sm:$0xff]
    %v148 = vld [vmem:[%s1 + $0x3a0] sm:$0xff]
    %v149 = vld [vmem:[%s1 + $0x3a8] sm:$0xff]
    %v150 = vld [vmem:[%s1 + $0x3b0] sm:$0xff]
    %v151 = vld [vmem:[%s1 + $0x3b8] sm:$0xff]
    %v152 = vld [vmem:[%s1 + $0x3c0] sm:$0xff]
    %v153 = vld [vmem:[%s1 + $0x3c8] sm:$0xff]
    %v154 = vld [vmem:[%s1 + $0x3d0] sm:$0xff]
    %v155 = vld [vmem:[%s1 + $0x3d8] sm:$0xff]
    %v156 = vld [vmem:[%s1 + $0x3e0] sm:$0xff]
    %v157 = vld [vmem:[%s1 + $0x3e8] sm:$0xff]
    %v158 = vld [vmem:[%s1 + $0x3f0] sm:$0xff]
    %v159 = vld [vmem:[%s1 + $0x3f8] sm:$0xff]
    %v162 = vcombine.high %v30, %v30
    %v164 = vunpack.c.l.s4 1983009808
    %v165 = vunpack.c.0.s8 %v164
    %v166 = vlaneseq
    %v167 = vshrl.u32 %v166, 7
    %v168 = vsub.s32 %v165, %v167
    %v169 = vrot.slane %v30, %v168
    %v171 = vunpack.c.l.s4 1983009808
    %v172 = vunpack.c.0.s8 %v171
    %v173 = vlaneseq
    %v174 = vshrl.u32 %v173, 7
    %v175 = vsub.s32 %v172, %v174
    %v176 = vrot.slane %v162, %v175
    %v177 = vcombine.high %v169, %v169
    %v178 = vcombine.high %v176, %v176
    %v179 = vcombine.high %v31, %v31
    %v181 = vunpack.c.l.s4 1983009808
    %v182 = vunpack.c.0.s8 %v181
    %v183 = vlaneseq
    %v184 = vshrl.u32 %v183, 7
    %v185 = vsub.s32 %v182, %v184
    %v186 = vrot.slane %v31, %v185
    %v188 = vunpack.c.l.s4 1983009808
    %v189 = vunpack.c.0.s8 %v188
    %v190 = vlaneseq
    %v191 = vshrl.u32 %v190, 7
    %v192 = vsub.s32 %v189, %v191
    %v193 = vrot.slane %v179, %v192
    %v194 = vcombine.high %v186, %v186
    %v195 = vcombine.high %v193, %v193
    %204 = vmatprep.subr.mxu0 0.0
    %205 = vmatpush1.msra.mxu0 %v32
    %206 = vmatprep.subr.mxu0 0.0
    %207 = vmatpush1.msra.mxu0 %v33
    %208 = vmatprep.subr.mxu0 0.0
    %209 = vmatpush1.msra.mxu0 %v34
    %210 = vmatprep.subr.mxu0 0.0
    %211 = vmatpush1.msra.mxu0 %v35
    %212 = vmatprep.subr.mxu0 0.0
    %213 = vmatpush1.msra.mxu0 %v36
    %214 = vmatprep.subr.mxu0 0.0
    %215 = vmatpush1.msra.mxu0 %v37
    %216 = vmatprep.subr.mxu0 0.0
    %217 = vmatpush1.msra.mxu0 %v38
    %218 = vmatprep.subr.mxu0 0.0
    %219 = vmatpush1.msra.mxu0 %v39
    %220 = vmatprep.subr.mxu0 0.0
    %221 = vmatpush1.msra.mxu0 %v40
    %222 = vmatprep.subr.mxu0 0.0
    %223 = vmatpush1.msra.mxu0 %v41
    %224 = vmatprep.subr.mxu0 0.0
    %225 = vmatpush1.msra.mxu0 %v42
    %226 = vmatprep.subr.mxu0 0.0
    %227 = vmatpush1.msra.mxu0 %v43
    %228 = vmatprep.subr.mxu0 0.0
    %229 = vmatpush1.msra.mxu0 %v44
    %230 = vmatprep.subr.mxu0 0.0
    %231 = vmatpush1.msra.mxu0 %v45
    %232 = vmatprep.subr.mxu0 0.0
    %233 = vmatpush1.msra.mxu0 %v46
    %234 = vmatprep.subr.mxu0 0.0
    %235 = vmatpush1.msra.mxu0 %v47
    %236 = vmatprep.subr.mxu0 0.0
    %237 = vmatpush1.msra.mxu0 %v48
    %238 = vmatprep.subr.mxu0 0.0
    %239 = vmatpush1.msra.mxu0 %v49
    %240 = vmatprep.subr.mxu0 0.0
    %241 = vmatpush1.msra.mxu0 %v50
    %242 = vmatprep.subr.mxu0 0.0
    %243 = vmatpush1.msra.mxu0 %v51
    %244 = vmatprep.subr.mxu0 0.0
    %245 = vmatpush1.msra.mxu0 %v52
    %246 = vmatprep.subr.mxu0 0.0
    %247 = vmatpush1.msra.mxu0 %v53
    %248 = vmatprep.subr.mxu0 0.0
    %249 = vmatpush1.msra.mxu0 %v54
    %250 = vmatprep.subr.mxu0 0.0
    %251 = vmatpush1.msra.mxu0 %v55
    %252 = vmatprep.subr.mxu0 0.0
    %253 = vmatpush1.msra.mxu0 %v56
    %254 = vmatprep.subr.mxu0 0.0
    %255 = vmatpush1.msra.mxu0 %v57
    %256 = vmatprep.subr.mxu0 0.0
    %257 = vmatpush1.msra.mxu0 %v58
    %258 = vmatprep.subr.mxu0 0.0
    %259 = vmatpush1.msra.mxu0 %v59
    %260 = vmatprep.subr.mxu0 0.0
    %261 = vmatpush1.msra.mxu0 %v60
    %262 = vmatprep.subr.mxu0 0.0
    %263 = vmatpush1.msra.mxu0 %v61
    %264 = vmatprep.subr.mxu0 0.0
    %265 = vmatpush1.msra.mxu0 %v62
    %266 = vmatprep.subr.mxu0 0.0
    %267 = vmatpush1.msra.mxu0 %v63
    %268 = vmatprep.mubr.f32.mxu0 %v177
    %269 = vmatmul.mubr.f32.gmra.mrb[0].mxu0 %v169
    %v270 = vpop.f32.mrb[0].mxu0
    %v271 = vadd.f32 0.0, %v270
    %v272 = vpop.f32.mrb[0].mxu0
    %273 = vdwg.mxu0
    %274 = vmatprep.subr.mxu0 0.0
    %275 = vmatpush1.msra.mxu0 %v64
    %276 = vmatprep.subr.mxu0 0.0
    %277 = vmatpush1.msra.mxu0 %v65
    %278 = vmatprep.subr.mxu0 0.0
    %279 = vmatpush1.msra.mxu0 %v66
    %280 = vmatprep.subr.mxu0 0.0
    %281 = vmatpush1.msra.mxu0 %v67
    %282 = vmatprep.subr.mxu0 0.0
    %283 = vmatpush1.msra.mxu0 %v68
    %284 = vmatprep.subr.mxu0 0.0
    %285 = vmatpush1.msra.mxu0 %v69
    %286 = vmatprep.subr.mxu0 0.0
    %287 = vmatpush1.msra.mxu0 %v70
    %288 = vmatprep.subr.mxu0 0.0
    %289 = vmatpush1.msra.mxu0 %v71
    %290 = vmatprep.subr.mxu0 0.0
    %291 = vmatpush1.msra.mxu0 %v72
    %292 = vmatprep.subr.mxu0 0.0
    %293 = vmatpush1.msra.mxu0 %v73
    %294 = vmatprep.subr.mxu0 0.0
    %295 = vmatpush1.msra.mxu0 %v74
    %296 = vmatprep.subr.mxu0 0.0
    %297 = vmatpush1.msra.mxu0 %v75
    %298 = vmatprep.subr.mxu0 0.0
    %299 = vmatpush1.msra.mxu0 %v76
    %300 = vmatprep.subr.mxu0 0.0
    %301 = vmatpush1.msra.mxu0 %v77
    %302 = vmatprep.subr.mxu0 0.0
    %303 = vmatpush1.msra.mxu0 %v78
    %304 = vmatprep.subr.mxu0 0.0
    %305 = vmatpush1.msra.mxu0 %v79
    %306 = vmatprep.subr.mxu0 0.0
    %307 = vmatpush1.msra.mxu0 %v80
    %308 = vmatprep.subr.mxu0 0.0
    %309 = vmatpush1.msra.mxu0 %v81
    %310 = vmatprep.subr.mxu0 0.0
    %311 = vmatpush1.msra.mxu0 %v82
    %312 = vmatprep.subr.mxu0 0.0
    %313 = vmatpush1.msra.mxu0 %v83
    %314 = vmatprep.subr.mxu0 0.0
    %315 = vmatpush1.msra.mxu0 %v84
    %316 = vmatprep.subr.mxu0 0.0
    %317 = vmatpush1.msra.mxu0 %v85
    %318 = vmatprep.subr.mxu0 0.0
    %319 = vmatpush1.msra.mxu0 %v86
    %320 = vmatprep.subr.mxu0 0.0
    %321 = vmatpush1.msra.mxu0 %v87
    %322 = vmatprep.subr.mxu0 0.0
    %323 = vmatpush1.msra.mxu0 %v88
    %324 = vmatprep.subr.mxu0 0.0
    %325 = vmatpush1.msra.mxu0 %v89
    %326 = vmatprep.subr.mxu0 0.0
    %327 = vmatpush1.msra.mxu0 %v90
    %328 = vmatprep.subr.mxu0 0.0
    %329 = vmatpush1.msra.mxu0 %v91
    %330 = vmatprep.subr.mxu0 0.0
    %331 = vmatpush1.msra.mxu0 %v92
    %332 = vmatprep.subr.mxu0 0.0
    %333 = vmatpush1.msra.mxu0 %v93
    %334 = vmatprep.subr.mxu0 0.0
    %335 = vmatpush1.msra.mxu0 %v94
    %336 = vmatprep.subr.mxu0 0.0
    %337 = vmatpush1.msra.mxu0 %v95
    %338 = vmatprep.mubr.f32.mxu0 %v178
    %339 = vmatmul.mubr.f32.gmra.mrb[0].mxu0 %v176
    %v340 = vpop.f32.mrb[0].mxu0
    %v341 = vadd.f32 %v271, %v340
    %v342 = vpop.f32.mrb[0].mxu0
    %343 = vdwg.mxu0
    %344 = vmatprep.subr.mxu0 0.0
    %345 = vmatpush1.msra.mxu0 %v96
    %346 = vmatprep.subr.mxu0 0.0
    %347 = vmatpush1.msra.mxu0 %v97
    %348 = vmatprep.subr.mxu0 0.0
    %349 = vmatpush1.msra.mxu0 %v98
    %350 = vmatprep.subr.mxu0 0.0
    %351 = vmatpush1.msra.mxu0 %v99
    %352 = vmatprep.subr.mxu0 0.0
    %353 = vmatpush1.msra.mxu0 %v100
    %354 = vmatprep.subr.mxu0 0.0
    %355 = vmatpush1.msra.mxu0 %v101
    %356 = vmatprep.subr.mxu0 0.0
    %357 = vmatpush1.msra.mxu0 %v102
    %358 = vmatprep.subr.mxu0 0.0
    %359 = vmatpush1.msra.mxu0 %v103
    %360 = vmatprep.subr.mxu0 0.0
    %361 = vmatpush1.msra.mxu0 %v104
    %362 = vmatprep.subr.mxu0 0.0
    %363 = vmatpush1.msra.mxu0 %v105
    %364 = vmatprep.subr.mxu0 0.0
    %365 = vmatpush1.msra.mxu0 %v106
    %366 = vmatprep.subr.mxu0 0.0
    %367 = vmatpush1.msra.mxu0 %v107
    %368 = vmatprep.subr.mxu0 0.0
    %369 = vmatpush1.msra.mxu0 %v108
    %370 = vmatprep.subr.mxu0 0.0
    %371 = vmatpush1.msra.mxu0 %v109
    %372 = vmatprep.subr.mxu0 0.0
    %373 = vmatpush1.msra.mxu0 %v110
    %374 = vmatprep.subr.mxu0 0.0
    %375 = vmatpush1.msra.mxu0 %v111
    %376 = vmatprep.subr.mxu0 0.0
    %377 = vmatpush1.msra.mxu0 %v112
    %378 = vmatprep.subr.mxu0 0.0
    %379 = vmatpush1.msra.mxu0 %v113
    %380 = vmatprep.subr.mxu0 0.0
    %381 = vmatpush1.msra.mxu0 %v114
    %382 = vmatprep.subr.mxu0 0.0
    %383 = vmatpush1.msra.mxu0 %v115
    %384 = vmatprep.subr.mxu0 0.0
    %385 = vmatpush1.msra.mxu0 %v116
    %386 = vmatprep.subr.mxu0 0.0
    %387 = vmatpush1.msra.mxu0 %v117
    %388 = vmatprep.subr.mxu0 0.0
    %389 = vmatpush1.msra.mxu0 %v118
    %390 = vmatprep.subr.mxu0 0.0
    %391 = vmatpush1.msra.mxu0 %v119
    %392 = vmatprep.subr.mxu0 0.0
    %393 = vmatpush1.msra.mxu0 %v120
    %394 = vmatprep.subr.mxu0 0.0
    %395 = vmatpush1.msra.mxu0 %v121
    %396 = vmatprep.subr.mxu0 0.0
    %397 = vmatpush1.msra.mxu0 %v122
    %398 = vmatprep.subr.mxu0 0.0
    %399 = vmatpush1.msra.mxu0 %v123
    %400 = vmatprep.subr.mxu0 0.0
    %401 = vmatpush1.msra.mxu0 %v124
    %402 = vmatprep.subr.mxu0 0.0
    %403 = vmatpush1.msra.mxu0 %v125
    %404 = vmatprep.subr.mxu0 0.0
    %405 = vmatpush1.msra.mxu0 %v126
    %406 = vmatprep.subr.mxu0 0.0
    %407 = vmatpush1.msra.mxu0 %v127
    %408 = vmatprep.mubr.f32.mxu0 %v194
    %409 = vmatmul.mubr.f32.gmra.mrb[0].mxu0 %v186
    %v410 = vpop.f32.mrb[0].mxu0
    %v411 = vadd.f32 %v341, %v410
    %v412 = vpop.f32.mrb[0].mxu0
    %413 = vdwg.mxu0
    %414 = vmatprep.subr.mxu0 0.0
    %415 = vmatpush1.msra.mxu0 %v128
    %416 = vmatprep.subr.mxu0 0.0
    %417 = vmatpush1.msra.mxu0 %v129
    %418 = vmatprep.subr.mxu0 0.0
    %419 = vmatpush1.msra.mxu0 %v130
    %420 = vmatprep.subr.mxu0 0.0
    %421 = vmatpush1.msra.mxu0 %v131
    %422 = vmatprep.subr.mxu0 0.0
    %423 = vmatpush1.msra.mxu0 %v132
    %424 = vmatprep.subr.mxu0 0.0
    %425 = vmatpush1.msra.mxu0 %v133
    %426 = vmatprep.subr.mxu0 0.0
    %427 = vmatpush1.msra.mxu0 %v134
    %428 = vmatprep.subr.mxu0 0.0
    %429 = vmatpush1.msra.mxu0 %v135
    %430 = vmatprep.subr.mxu0 0.0
    %431 = vmatpush1.msra.mxu0 %v136
    %432 = vmatprep.subr.mxu0 0.0
    %433 = vmatpush1.msra.mxu0 %v137
    %434 = vmatprep.subr.mxu0 0.0
    %435 = vmatpush1.msra.mxu0 %v138
    %436 = vmatprep.subr.mxu0 0.0
    %437 = vmatpush1.msra.mxu0 %v139
    %438 = vmatprep.subr.mxu0 0.0
    %439 = vmatpush1.msra.mxu0 %v140
    %440 = vmatprep.subr.mxu0 0.0
    %441 = vmatpush1.msra.mxu0 %v141
    %442 = vmatprep.subr.mxu0 0.0
    %443 = vmatpush1.msra.mxu0 %v142
    %444 = vmatprep.subr.mxu0 0.0
    %445 = vmatpush1.msra.mxu0 %v143
    %446 = vmatprep.subr.mxu0 0.0
    %447 = vmatpush1.msra.mxu0 %v144
    %448 = vmatprep.subr.mxu0 0.0
    %449 = vmatpush1.msra.mxu0 %v145
    %450 = vmatprep.subr.mxu0 0.0
    %451 = vmatpush1.msra.mxu0 %v146
    %452 = vmatprep.subr.mxu0 0.0
    %453 = vmatpush1.msra.mxu0 %v147
    %454 = vmatprep.subr.mxu0 0.0
    %455 = vmatpush1.msra.mxu0 %v148
    %456 = vmatprep.subr.mxu0 0.0
    %457 = vmatpush1.msra.mxu0 %v149
    %458 = vmatprep.subr.mxu0 0.0
    %459 = vmatpush1.msra.mxu0 %v150
    %460 = vmatprep.subr.mxu0 0.0
    %461 = vmatpush1.msra.mxu0 %v151
    %462 = vmatprep.subr.mxu0 0.0
    %463 = vmatpush1.msra.mxu0 %v152
    %464 = vmatprep.subr.mxu0 0.0
    %465 = vmatpush1.msra.mxu0 %v153
    %466 = vmatprep.subr.mxu0 0.0
    %467 = vmatpush1.msra.mxu0 %v154
    %468 = vmatprep.subr.mxu0 0.0
    %469 = vmatpush1.msra.mxu0 %v155
    %470 = vmatprep.subr.mxu0 0.0
    %471 = vmatpush1.msra.mxu0 %v156
    %472 = vmatprep.subr.mxu0 0.0
    %473 = vmatpush1.msra.mxu0 %v157
    %474 = vmatprep.subr.mxu0 0.0
    %475 = vmatpush1.msra.mxu0 %v158
    %476 = vmatprep.subr.mxu0 0.0
    %477 = vmatpush1.msra.mxu0 %v159
    %478 = vmatprep.mubr.f32.mxu0 %v195
    %479 = vmatmul.mubr.f32.gmra.mrb[0].mxu0 %v193
    %v480 = vpop.f32.mrb[0].mxu0
    %v481 = vadd.f32 %v411, %v480
    %v482 = vpop.f32.mrb[0].mxu0
    %483 = vdwg.mxu0
    %v484 = vld [vmem:[#allocation2] sm:$0x3]
    %v485 = vld [vmem:[%s2] sm:$0xf]
    %vm486 = vcmask 31744
    %v488 = vsel %vm486, %v481, 0
    %vm490 = vcmask 1043456
    %v492 = vsel %vm490, %v485, 0
    %494 = vmatprep.subr.mxu0 0.0
    %495 = vmatpush1.msra.mxu0 %v492
    %496 = vmatprep.subr.mxu0 0.0
    %497 = vmatpush1.msra.mxu0 0.0
    %498 = vmatprep.subr.mxu0 0.0
    %499 = vmatpush1.msra.mxu0 0.0
    %500 = vmatprep.subr.mxu0 0.0
    %501 = vmatpush1.msra.mxu0 0.0
    %502 = vmatprep.subr.mxu0 0.0
    %503 = vmatpush1.msra.mxu0 0.0
    %504 = vmatprep.subr.mxu0 0.0
    %505 = vmatpush1.msra.mxu0 0.0
    %506 = vmatprep.subr.mxu0 0.0
    %507 = vmatpush1.msra.mxu0 0.0
    %508 = vmatprep.subr.mxu0 0.0
    %509 = vmatpush1.msra.mxu0 0.0
    %510 = vmatprep.subr.mxu0 0.0
    %511 = vmatpush1.msra.mxu0 0.0
    %512 = vmatprep.subr.mxu0 0.0
    %513 = vmatpush1.msra.mxu0 0.0
    %514 = vmatprep.subr.mxu0 0.0
    %515 = vmatpush1.msra.mxu0 0.0
    %516 = vmatprep.subr.mxu0 0.0
    %517 = vmatpush1.msra.mxu0 0.0
    %518 = vmatprep.subr.mxu0 0.0
    %519 = vmatpush1.msra.mxu0 0.0
    %520 = vmatprep.subr.mxu0 0.0
    %521 = vmatpush1.msra.mxu0 0.0
    %522 = vmatprep.subr.mxu0 0.0
    %523 = vmatpush1.msra.mxu0 0.0
    %524 = vmatprep.subr.mxu0 0.0
    %525 = vmatpush1.msra.mxu0 0.0
    %526 = vmatprep.subr.mxu0 0.0
    %527 = vmatpush1.msra.mxu0 0.0
    %528 = vmatprep.subr.mxu0 0.0
    %529 = vmatpush1.msra.mxu0 0.0
    %530 = vmatprep.subr.mxu0 0.0
    %531 = vmatpush1.msra.mxu0 0.0
    %532 = vmatprep.subr.mxu0 0.0
    %533 = vmatpush1.msra.mxu0 0.0
    %534 = vmatprep.subr.mxu0 0.0
    %535 = vmatpush1.msra.mxu0 0.0
    %536 = vmatprep.subr.mxu0 0.0
    %537 = vmatpush1.msra.mxu0 0.0
    %538 = vmatprep.subr.mxu0 0.0
    %539 = vmatpush1.msra.mxu0 0.0
    %540 = vmatprep.subr.mxu0 0.0
    %541 = vmatpush1.msra.mxu0 0.0
    %542 = vmatprep.subr.mxu0 0.0
    %543 = vmatpush1.msra.mxu0 0.0
    %544 = vmatprep.subr.mxu0 0.0
    %545 = vmatpush1.msra.mxu0 0.0
    %546 = vmatprep.subr.mxu0 0.0
    %547 = vmatpush1.msra.mxu0 0.0
    %548 = vmatprep.subr.mxu0 0.0
    %549 = vmatpush1.msra.mxu0 0.0
    %550 = vmatprep.subr.mxu0 0.0
    %551 = vmatpush1.msra.mxu0 0.0
    %552 = vmatprep.subr.mxu0 0.0
    %553 = vmatpush1.msra.mxu0 0.0
    %554 = vmatprep.subr.mxu0 0.0
    %555 = vmatpush1.msra.mxu0 0.0
    %556 = vmatprep.subr.mxu0 0.0
    %557 = vmatpush1.msra.mxu0 0.0
    %558 = vmatprep.mubr.f32.mxu0 0.0
    %559 = vmatmul.mubr.f32.gmra.mrb[0].mxu0 %v488
    %v560 = vpop.f32.mrb[0].mxu0
    %v561 = vadd.f32 0.0, %v560
    %v562 = vpop.f32.mrb[0].mxu0
    %563 = vdwg.mxu0
    %v564 = vadd.f32 %v484, %v561
    %vm565 = vcmask 25600
    %566 = vst.msk [vmem:[#allocation2] sm:$0x3] %vm565, %v564
    // Predicated region
    $region30: #{fc_head_forward.1} parent=1 // pred_check
      %p567 = pneg %p24
    $region31: #{fc_head_forward.1} parent=1 // pred_check_branch
      %569 = sbr.rel (%p567) target = $region33
    $region32: #{fc_head_forward.1} parent=1 // pred_region
      %v570 = vld [vmem:[#allocation2] sm:$0x3]
      %v571 = vld [vmem:[%s3] sm:$0x1]
      %v573 = vlaneseq
      %v574 = vshrl.u32 %v573, 7
      %v575 = vsub.s32 0, %v574
      %v576 = vrot.slane %v571, %v575
      %v578 = vadd.f32 %v570, %v576
      %v579 = vmax.f32 %v578, 0.0
      %v580 = vld [vmem:[%s4] sm:$0xf]
      %v581 = vld [vmem:[%s5] sm:$0x1]
      %v583 = vlaneseq
      %v584 = vshrl.u32 %v583, 7
      %v585 = vsub.s32 0, %v584
      %v586 = vrot.slane %v581, %v585
      %v589 = vsel %vm486, %v579, 0
      %v592 = vsel %vm490, %v580, 0
      %594 = vmatprep.subr.mxu0 0.0
      %595 = vmatpush1.msra.mxu0 %v592
      %596 = vmatprep.subr.mxu0 0.0
      %597 = vmatpush1.msra.mxu0 0.0
      %598 = vmatprep.subr.mxu0 0.0
      %599 = vmatpush1.msra.mxu0 0.0
      %600 = vmatprep.subr.mxu0 0.0
      %601 = vmatpush1.msra.mxu0 0.0
      %602 = vmatprep.subr.mxu0 0.0
      %603 = vmatpush1.msra.mxu0 0.0
      %604 = vmatprep.subr.mxu0 0.0
      %605 = vmatpush1.msra.mxu0 0.0
      %606 = vmatprep.subr.mxu0 0.0
      %607 = vmatpush1.msra.mxu0 0.0
      %608 = vmatprep.subr.mxu0 0.0
      %609 = vmatpush1.msra.mxu0 0.0
      %610 = vmatprep.subr.mxu0 0.0
      %611 = vmatpush1.msra.mxu0 0.0
      %612 = vmatprep.subr.mxu0 0.0
      %613 = vmatpush1.msra.mxu0 0.0
      %614 = vmatprep.subr.mxu0 0.0
      %615 = vmatpush1.msra.mxu0 0.0
      %616 = vmatprep.subr.mxu0 0.0
      %617 = vmatpush1.msra.mxu0 0.0
      %618 = vmatprep.subr.mxu0 0.0
      %619 = vmatpush1.msra.mxu0 0.0
      %620 = vmatprep.subr.mxu0 0.0
      %621 = vmatpush1.msra.mxu0 0.0
      %622 = vmatprep.subr.mxu0 0.0
      %623 = vmatpush1.msra.mxu0 0.0
      %624 = vmatprep.subr.mxu0 0.0
      %625 = vmatpush1.msra.mxu0 0.0
      %626 = vmatprep.subr.mxu0 0.0
      %627 = vmatpush1.msra.mxu0 0.0
      %628 = vmatprep.subr.mxu0 0.0
      %629 = vmatpush1.msra.mxu0 0.0
      %630 = vmatprep.subr.mxu0 0.0
      %631 = vmatpush1.msra.mxu0 0.0
      %632 = vmatprep.subr.mxu0 0.0
      %633 = vmatpush1.msra.mxu0 0.0
      %634 = vmatprep.subr.mxu0 0.0
      %635 = vmatpush1.msra.mxu0 0.0
      %636 = vmatprep.subr.mxu0 0.0
      %637 = vmatpush1.msra.mxu0 0.0
      %638 = vmatprep.subr.mxu0 0.0
      %639 = vmatpush1.msra.mxu0 0.0
      %640 = vmatprep.subr.mxu0 0.0
      %641 = vmatpush1.msra.mxu0 0.0
      %642 = vmatprep.subr.mxu0 0.0
      %643 = vmatpush1.msra.mxu0 0.0
      %644 = vmatprep.subr.mxu0 0.0
      %645 = vmatpush1.msra.mxu0 0.0
      %646 = vmatprep.subr.mxu0 0.0
      %647 = vmatpush1.msra.mxu0 0.0
      %648 = vmatprep.subr.mxu0 0.0
      %649 = vmatpush1.msra.mxu0 0.0
      %650 = vmatprep.subr.mxu0 0.0
      %651 = vmatpush1.msra.mxu0 0.0
      %652 = vmatprep.subr.mxu0 0.0
      %653 = vmatpush1.msra.mxu0 0.0
      %654 = vmatprep.subr.mxu0 0.0
      %655 = vmatpush1.msra.mxu0 0.0
      %656 = vmatprep.subr.mxu0 0.0
      %657 = vmatpush1.msra.mxu0 0.0
      %658 = vmatprep.mubr.f32.mxu0 0.0
      %659 = vmatmul.mubr.f32.gmra.mrb[0].mxu0 %v589
      %v660 = vpop.f32.mrb[0].mxu0
      %v661 = vadd.f32 %v586, %v660
      %v662 = vpop.f32.mrb[0].mxu0
      %663 = vdwg.mxu0
      %664 = vst [vmem:[#allocation3] sm:$0x3] %v661
    $region33: #{fc_head_forward.1} parent=1 // pred_fallthru
      _
    // Predicated region
    $region34: #{fc_head_forward.1} parent=1 // pred_check
      _
    $region35: #{fc_head_forward.1} parent=1 // pred_check_branch
      %666 = sbr.rel (0) target = $region37
    $region36: #{fc_head_forward.1} parent=1 // pred_region
      %s668 = ssub.s32 32, 32
      %669 = vsyncadd [#allocation4], %s668
      %s671 = sshll.u32 [#allocation3], 4
      %s672 = int_to_ptr.vmem [resolvable:$true] %s671
      %674 = dma.vmem_to_hbm [thread:$0]  %s672, 32, %s6, [#allocation4]
    $region37: #{fc_head_forward.1} parent=1 // pred_fallthru
      _
    // Predicated region
    $region38: #{fc_head_forward.1} parent=1 // pred_check
      _
    $region39: #{fc_head_forward.1} parent=1 // pred_check_branch
      %676 = sbr.rel (0) target = $region41
    $region40: #{fc_head_forward.1} parent=1 // pred_region
      %677 = dma.done [#allocation4], 32
    $region41: #{fc_head_forward.1} parent=1 // pred_fallthru
      _
    %678 = vsyncpa [#allocation4], 1

</llo_original>
